<compile_context>
chip_gen: v7x
topology: tpu7x:2x2x1
jax: 0.10.0
libtpu: 0.0.40
codegen_flags: <defaults>
</compile_context>

<pallas_src>
import jax
import jax.numpy as jnp
from jax.experimental import pallas as pl
from jax.experimental.pallas import tpu as pltpu


def _round_up(x, m):
    return (x + m - 1) // m * m


def _large_action_head_kernel(
    x_ref,
    w1_ref, b1_ref,
    w2_ref, b2_ref,
    w3_ref, b3_ref,
    w4_ref, b4_ref,
    w5_ref, b5_ref,
    w6_ref, b6_ref,
    o_ref,
):
    """One batch tile of the full MLP: 6 matmuls + 5 ReLUs + final Tanh."""
    h = x_ref[...]                                   # bf16 (tb, hidden)

    def linear_relu(h, w_ref, b_ref):
        # bf16 MXU matmul, f32 accumulate, f32 bias, ReLU on VPU,
        # then carry bf16 activations (next matmul consumes bf16 anyway).
        y = jnp.dot(h, w_ref[...], preferred_element_type=jnp.float32)
        y = y + b_ref[...]               # bias (1, out) broadcasts over batch
        return jnp.maximum(y, 0.0).astype(jnp.bfloat16)

    h = linear_relu(h, w1_ref, b1_ref)
    h = linear_relu(h, w2_ref, b2_ref)
    h = linear_relu(h, w3_ref, b3_ref)
    h = linear_relu(h, w4_ref, b4_ref)
    h = linear_relu(h, w5_ref, b5_ref)

    y = jnp.dot(h, w6_ref[...], preferred_element_type=jnp.float32)
    y = y + b6_ref[...]
    o_ref[...] = jnp.tanh(y)                         # tanh on EUP, f32 out


def prepare_params(params):
    """One-time parameter prep (do NOT call per forward pass).

    Casts weights to bf16 and zero-pads every layer's output width to a
    multiple of 128 lanes (and the next layer's input rows to match), so all
    matmul outputs / stores are lane-dense.  ReLU(0)=0 and tanh(0)=0, and the
    padded rows of the following weight are zero, so results are unchanged.
    """
    hidden = params[0][0].shape[0]
    act_dim = params[-1][0].shape[1]
    pad_out = [_round_up(w.shape[1], 128) for (w, _) in params]
    pad_in = [hidden] + pad_out[:-1]

    layers = []
    for li, (w, b) in enumerate(params):
        d_in, d_out = w.shape
        w = jnp.pad(w, ((0, pad_in[li] - d_in), (0, pad_out[li] - d_out)))
        b = jnp.pad(b, ((0, 0), (0, pad_out[li] - d_out)))
        layers.append((w.astype(jnp.bfloat16), b.astype(jnp.float32)))

    return {"layers": layers, "hidden": hidden, "act_dim": act_dim,
            "out_pad": pad_out[-1]}


def large_action_head(x, prepped, *, batch_tile=256):
    """x: (B, hidden) float32/bf16. prepped: output of prepare_params()."""
    layers = prepped["layers"]
    hidden = prepped["hidden"]
    act_dim = prepped["act_dim"]
    out_pad = prepped["out_pad"]

    B, hx = x.shape
    assert hx == hidden, (hx, hidden)

    # Batch tile: multiple of 8 sublanes, capped at `batch_tile` (MXU rows).
    b8 = _round_up(B, 8)
    if b8 <= batch_tile:
        tb = b8
        b_pad = b8
    else:
        tb = batch_tile
        b_pad = _round_up(B, tb)

    # bf16 x: halves x DMA + its double-buffered VMEM; MXU consumes bf16 LHS.
    x = x.astype(jnp.bfloat16)
    if b_pad != B:
        x = jnp.pad(x, ((0, b_pad - B), (0, 0)))

    flat_inputs = [x]
    in_specs = [pl.BlockSpec((tb, hidden), lambda i: (i, 0))]
    for (w, b) in layers:
        flat_inputs.extend([w, b])
        # Resident across all batch tiles (constant block index); single-
        # buffered since they are never re-fetched -> halves weight VMEM.
        in_specs.append(pl.BlockSpec(w.shape, lambda i: (0, 0),
                                     pipeline_mode=pl.Buffered(1)))
        in_specs.append(pl.BlockSpec(b.shape, lambda i: (0, 0),
                                     pipeline_mode=pl.Buffered(1)))

    out_spec = pl.BlockSpec((tb, out_pad), lambda i: (i, 0))

    # Advisory cost estimate for XLA's scheduler.
    flops = sum(2 * b_pad * w.shape[0] * w.shape[1] for (w, _) in layers)
    bytes_accessed = (sum(int(a.size) * a.dtype.itemsize for a in flat_inputs)
                      + b_pad * out_pad * 4)
    cost = pl.CostEstimate(flops=int(flops),
                           transcendentals=int(b_pad * out_pad),
                           bytes_accessed=int(bytes_accessed))

    # VMEM budget: single-buffered resident weights/biases + double-buffered
    # bf16 x tile + double-buffered f32 out tile + activation headroom, with
    # margin; capped below the *device's* physical VMEM (64 MiB on v7x).
    weight_bytes = sum(int(a.size) * a.dtype.itemsize for a in flat_inputs[1:])
    max_width = max(hidden, max(w.shape[1] for (w, _) in layers))
    tile_bytes = (2 * tb * hidden * 2          # bf16 x, double-buffered
                  + 2 * tb * out_pad * 4       # f32 out, double-buffered
                  + 4 * tb * max_width * 4)    # activation/scratch headroom
    try:
        vmem_cap = int(pltpu.get_tpu_info().vmem_capacity_bytes)
    except Exception:  # pragma: no cover - conservative fallback (v7x per-TC)
        vmem_cap = 64 << 20
    vmem_limit = int((weight_bytes + tile_bytes) * 1.3) + (16 << 20)
    vmem_limit = max(min(vmem_limit, int(0.85 * vmem_cap)), 16 << 20)

    grid_steps = b_pad // tb
    # With a single batch tile, megacore-sharding the batch axis would only
    # duplicate the resident weights into both TCs' VMEM on v7x.
    dim_sem = ("arbitrary",) if grid_steps == 1 else ("parallel",)

    out = pl.pallas_call(
        _large_action_head_kernel,
        out_shape=jax.ShapeDtypeStruct((b_pad, out_pad), jnp.float32),
        grid=(grid_steps,),
        in_specs=in_specs,
        out_specs=out_spec,
        compiler_params=pltpu.CompilerParams(
            dimension_semantics=dim_sem,
            vmem_limit_bytes=vmem_limit),
        cost_estimate=cost,
    )(*flat_inputs)

    return out[:B, :act_dim]


def init_params(key, hidden_size, act_dim):
    """Deterministic PyTorch-style (uniform +/-1/sqrt(fan_in)) init.

    Weight layout is (in_features, out_features); bias is (1, out_features).
    """
    dims = [
        (hidden_size, hidden_size),
        (hidden_size, hidden_size),
        (hidden_size, hidden_size),
        (hidden_size, hidden_size // 2),
        (hidden_size // 2, hidden_size // 4),
        (hidden_size // 4, act_dim),
    ]
    params = []
    for (fan_in, fan_out) in dims:
        key, kw, kb = jax.random.split(key, 3)
        bound = 1.0 / jnp.sqrt(fan_in)
        w = jax.random.uniform(kw, (fan_in, fan_out), jnp.float32, -bound, bound)
        b = jax.random.uniform(kb, (1, fan_out), jnp.float32, -bound, bound)
        params.append((w, b))
    return params


def reference(x, params):
    """Pure-JAX f32 reference for correctness checking."""
    h = x
    for i, (w, b) in enumerate(params):
        h = h @ w + b
        if i < len(params) - 1:
            h = jnp.maximum(h, 0.0)
        else:
            h = jnp.tanh(h)
    return h


if __name__ == "__main__":
    key = jax.random.PRNGKey(0)
    hidden_size = 32
    act_dim = 8
    batch = 2

    key, kx = jax.random.split(key)
    x = jax.random.normal(kx, (batch, hidden_size), jnp.float32)
    params = init_params(key, hidden_size, act_dim)

    prepped = prepare_params(params)          # one-time weight prep (bf16 + pad)
    out = large_action_head(x, prepped)
    out = jax.block_until_ready(out)

    ref = reference(x, params)
    assert out.shape == (batch, act_dim), out.shape
    assert out.dtype == jnp.float32, out.dtype
    # bf16 x/weights/activations (f32 accumulate) -> looser tol vs f32 ref.
    err = float(jnp.max(jnp.abs(out - ref)))
    assert err < 3e-2, f"mismatch vs reference: max abs err {err}"

    print("KERNEL_OK")
</pallas_src>

<mosaic_0001>
module attributes {stable_mosaic.version = 11 : i64} {
  func.func @_large_action_head_kernel(%arg0: i32, %arg1: memref<8x32xbf16, #tpu.memory_space<vmem>>, %arg2: memref<32x128xbf16, #tpu.memory_space<vmem>>, %arg3: memref<1x128xf32, #tpu.memory_space<vmem>>, %arg4: memref<128x128xbf16, #tpu.memory_space<vmem>>, %arg5: memref<1x128xf32, #tpu.memory_space<vmem>>, %arg6: memref<128x128xbf16, #tpu.memory_space<vmem>>, %arg7: memref<1x128xf32, #tpu.memory_space<vmem>>, %arg8: memref<128x128xbf16, #tpu.memory_space<vmem>>, %arg9: memref<1x128xf32, #tpu.memory_space<vmem>>, %arg10: memref<128x128xbf16, #tpu.memory_space<vmem>>, %arg11: memref<1x128xf32, #tpu.memory_space<vmem>>, %arg12: memref<128x128xbf16, #tpu.memory_space<vmem>>, %arg13: memref<1x128xf32, #tpu.memory_space<vmem>>, %arg14: memref<8x128xf32, #tpu.memory_space<vmem>>) attributes {dimension_semantics = [#tpu.dimension_semantics<arbitrary>], iteration_bounds = array<i64: 1>, scalar_prefetch = 0 : i64, scratch_operands = 0 : i64, tpu.core_type = #tpu.core_type<tc>, window_params = [{transform_indices = @transform_0, window_bounds = array<i64: 8, 32>}, {pipeline_mode = #tpu.pipeline_mode<synchronous>, transform_indices = @transform_1, window_bounds = array<i64: 32, 128>}, {pipeline_mode = #tpu.pipeline_mode<synchronous>, transform_indices = @transform_2, window_bounds = array<i64: 1, 128>}, {pipeline_mode = #tpu.pipeline_mode<synchronous>, transform_indices = @transform_3, window_bounds = array<i64: 128, 128>}, {pipeline_mode = #tpu.pipeline_mode<synchronous>, transform_indices = @transform_4, window_bounds = array<i64: 1, 128>}, {pipeline_mode = #tpu.pipeline_mode<synchronous>, transform_indices = @transform_5, window_bounds = array<i64: 128, 128>}, {pipeline_mode = #tpu.pipeline_mode<synchronous>, transform_indices = @transform_6, window_bounds = array<i64: 1, 128>}, {pipeline_mode = #tpu.pipeline_mode<synchronous>, transform_indices = @transform_7, window_bounds = array<i64: 128, 128>}, {pipeline_mode = #tpu.pipeline_mode<synchronous>, transform_indices = @transform_8, window_bounds = array<i64: 1, 128>}, {pipeline_mode = #tpu.pipeline_mode<synchronous>, transform_indices = @transform_9, window_bounds = array<i64: 128, 128>}, {pipeline_mode = #tpu.pipeline_mode<synchronous>, transform_indices = @transform_10, window_bounds = array<i64: 1, 128>}, {pipeline_mode = #tpu.pipeline_mode<synchronous>, transform_indices = @transform_11, window_bounds = array<i64: 128, 128>}, {pipeline_mode = #tpu.pipeline_mode<synchronous>, transform_indices = @transform_12, window_bounds = array<i64: 1, 128>}, {transform_indices = @transform_13, window_bounds = array<i64: 8, 128>}]} {
    %c0 = arith.constant 0 : index
    %c0_0 = arith.constant 0 : index
    %0 = vector.load %arg1[%c0, %c0_0] : memref<8x32xbf16, #tpu.memory_space<vmem>>, vector<8x32xbf16>
    %c0_1 = arith.constant 0 : index
    %c0_2 = arith.constant 0 : index
    %1 = vector.load %arg2[%c0_1, %c0_2] : memref<32x128xbf16, #tpu.memory_space<vmem>>, vector<32x128xbf16>
    %cst = arith.constant dense<0.000000e+00> : vector<8x128xf32>
    %2 = tpu.matmul %0, %1, %cst {dimension_numbers = #tpu.dot_dimension_numbers<[1], [0], [0], [1], [0, 0, 1, 1], [], []>} : vector<8x32xbf16>, vector<32x128xbf16>, vector<8x128xf32> -> vector<8x128xf32>
    %c0_3 = arith.constant 0 : index
    %c0_4 = arith.constant 0 : index
    %3 = vector.load %arg3[%c0_3, %c0_4] : memref<1x128xf32, #tpu.memory_space<vmem>>, vector<1x128xf32>
    %4 = vector.broadcast %3 : vector<1x128xf32> to vector<8x128xf32>
    %5 = arith.addf %2, %4 : vector<8x128xf32>
    %cst_5 = arith.constant 0.000000e+00 : f32
    %6 = vector.broadcast %cst_5 : f32 to vector<8x128xf32>
    %7 = arith.maximumf %5, %6 : vector<8x128xf32>
    %8 = arith.truncf %7 : vector<8x128xf32> to vector<8x128xbf16>
    %c0_6 = arith.constant 0 : index
    %c0_7 = arith.constant 0 : index
    %9 = vector.load %arg4[%c0_6, %c0_7] : memref<128x128xbf16, #tpu.memory_space<vmem>>, vector<128x128xbf16>
    %cst_8 = arith.constant dense<0.000000e+00> : vector<8x128xf32>
    %10 = tpu.matmul %8, %9, %cst_8 {dimension_numbers = #tpu.dot_dimension_numbers<[1], [0], [0], [1], [0, 0, 1, 1], [], []>} : vector<8x128xbf16>, vector<128x128xbf16>, vector<8x128xf32> -> vector<8x128xf32>
    %c0_9 = arith.constant 0 : index
    %c0_10 = arith.constant 0 : index
    %11 = vector.load %arg5[%c0_9, %c0_10] : memref<1x128xf32, #tpu.memory_space<vmem>>, vector<1x128xf32>
    %12 = vector.broadcast %11 : vector<1x128xf32> to vector<8x128xf32>
    %13 = arith.addf %10, %12 : vector<8x128xf32>
    %cst_11 = arith.constant 0.000000e+00 : f32
    %14 = vector.broadcast %cst_11 : f32 to vector<8x128xf32>
    %15 = arith.maximumf %13, %14 : vector<8x128xf32>
    %16 = arith.truncf %15 : vector<8x128xf32> to vector<8x128xbf16>
    %c0_12 = arith.constant 0 : index
    %c0_13 = arith.constant 0 : index
    %17 = vector.load %arg6[%c0_12, %c0_13] : memref<128x128xbf16, #tpu.memory_space<vmem>>, vector<128x128xbf16>
    %cst_14 = arith.constant dense<0.000000e+00> : vector<8x128xf32>
    %18 = tpu.matmul %16, %17, %cst_14 {dimension_numbers = #tpu.dot_dimension_numbers<[1], [0], [0], [1], [0, 0, 1, 1], [], []>} : vector<8x128xbf16>, vector<128x128xbf16>, vector<8x128xf32> -> vector<8x128xf32>
    %c0_15 = arith.constant 0 : index
    %c0_16 = arith.constant 0 : index
    %19 = vector.load %arg7[%c0_15, %c0_16] : memref<1x128xf32, #tpu.memory_space<vmem>>, vector<1x128xf32>
    %20 = vector.broadcast %19 : vector<1x128xf32> to vector<8x128xf32>
    %21 = arith.addf %18, %20 : vector<8x128xf32>
    %cst_17 = arith.constant 0.000000e+00 : f32
    %22 = vector.broadcast %cst_17 : f32 to vector<8x128xf32>
    %23 = arith.maximumf %21, %22 : vector<8x128xf32>
    %24 = arith.truncf %23 : vector<8x128xf32> to vector<8x128xbf16>
    %c0_18 = arith.constant 0 : index
    %c0_19 = arith.constant 0 : index
    %25 = vector.load %arg8[%c0_18, %c0_19] : memref<128x128xbf16, #tpu.memory_space<vmem>>, vector<128x128xbf16>
    %cst_20 = arith.constant dense<0.000000e+00> : vector<8x128xf32>
    %26 = tpu.matmul %24, %25, %cst_20 {dimension_numbers = #tpu.dot_dimension_numbers<[1], [0], [0], [1], [0, 0, 1, 1], [], []>} : vector<8x128xbf16>, vector<128x128xbf16>, vector<8x128xf32> -> vector<8x128xf32>
    %c0_21 = arith.constant 0 : index
    %c0_22 = arith.constant 0 : index
    %27 = vector.load %arg9[%c0_21, %c0_22] : memref<1x128xf32, #tpu.memory_space<vmem>>, vector<1x128xf32>
    %28 = vector.broadcast %27 : vector<1x128xf32> to vector<8x128xf32>
    %29 = arith.addf %26, %28 : vector<8x128xf32>
    %cst_23 = arith.constant 0.000000e+00 : f32
    %30 = vector.broadcast %cst_23 : f32 to vector<8x128xf32>
    %31 = arith.maximumf %29, %30 : vector<8x128xf32>
    %32 = arith.truncf %31 : vector<8x128xf32> to vector<8x128xbf16>
    %c0_24 = arith.constant 0 : index
    %c0_25 = arith.constant 0 : index
    %33 = vector.load %arg10[%c0_24, %c0_25] : memref<128x128xbf16, #tpu.memory_space<vmem>>, vector<128x128xbf16>
    %cst_26 = arith.constant dense<0.000000e+00> : vector<8x128xf32>
    %34 = tpu.matmul %32, %33, %cst_26 {dimension_numbers = #tpu.dot_dimension_numbers<[1], [0], [0], [1], [0, 0, 1, 1], [], []>} : vector<8x128xbf16>, vector<128x128xbf16>, vector<8x128xf32> -> vector<8x128xf32>
    %c0_27 = arith.constant 0 : index
    %c0_28 = arith.constant 0 : index
    %35 = vector.load %arg11[%c0_27, %c0_28] : memref<1x128xf32, #tpu.memory_space<vmem>>, vector<1x128xf32>
    %36 = vector.broadcast %35 : vector<1x128xf32> to vector<8x128xf32>
    %37 = arith.addf %34, %36 : vector<8x128xf32>
    %cst_29 = arith.constant 0.000000e+00 : f32
    %38 = vector.broadcast %cst_29 : f32 to vector<8x128xf32>
    %39 = arith.maximumf %37, %38 : vector<8x128xf32>
    %40 = arith.truncf %39 : vector<8x128xf32> to vector<8x128xbf16>
    %c0_30 = arith.constant 0 : index
    %c0_31 = arith.constant 0 : index
    %41 = vector.load %arg12[%c0_30, %c0_31] : memref<128x128xbf16, #tpu.memory_space<vmem>>, vector<128x128xbf16>
    %cst_32 = arith.constant dense<0.000000e+00> : vector<8x128xf32>
    %42 = tpu.matmul %40, %41, %cst_32 {dimension_numbers = #tpu.dot_dimension_numbers<[1], [0], [0], [1], [0, 0, 1, 1], [], []>} : vector<8x128xbf16>, vector<128x128xbf16>, vector<8x128xf32> -> vector<8x128xf32>
    %c0_33 = arith.constant 0 : index
    %c0_34 = arith.constant 0 : index
    %43 = vector.load %arg13[%c0_33, %c0_34] : memref<1x128xf32, #tpu.memory_space<vmem>>, vector<1x128xf32>
    %44 = vector.broadcast %43 : vector<1x128xf32> to vector<8x128xf32>
    %45 = arith.addf %42, %44 : vector<8x128xf32>
    %46 = math.tanh %45 : vector<8x128xf32>
    %c0_35 = arith.constant 0 : index
    %c0_36 = arith.constant 0 : index
    %47 = vector.load %arg14[%c0_35, %c0_36] : memref<8x128xf32, #tpu.memory_space<vmem>>, vector<8x128xf32>
    tpu.vector_store %arg14[%c0_35, %c0_36], %46 {strides = array<i32>} : memref<8x128xf32, #tpu.memory_space<vmem>>, vector<8x128xf32>,
    return
  }
  func.func @transform_0(%arg0: i32) -> (i32, i32) {
    %c0_i32 = arith.constant 0 : i32
    %c0_i32_0 = arith.constant 0 : i32
    return %arg0, %c0_i32 : i32, i32
  }
  func.func @transform_1(%arg0: i32) -> (i32, i32) {
    %c0_i32 = arith.constant 0 : i32
    %c0_i32_0 = arith.constant 0 : i32
    %c0_i32_1 = arith.constant 0 : i32
    return %c0_i32, %c0_i32_0 : i32, i32
  }
  func.func @transform_2(%arg0: i32) -> (i32, i32) {
    %c0_i32 = arith.constant 0 : i32
    %c0_i32_0 = arith.constant 0 : i32
    %c0_i32_1 = arith.constant 0 : i32
    return %c0_i32, %c0_i32_0 : i32, i32
  }
  func.func @transform_3(%arg0: i32) -> (i32, i32) {
    %c0_i32 = arith.constant 0 : i32
    %c0_i32_0 = arith.constant 0 : i32
    %c0_i32_1 = arith.constant 0 : i32
    return %c0_i32, %c0_i32_0 : i32, i32
  }
  func.func @transform_4(%arg0: i32) -> (i32, i32) {
    %c0_i32 = arith.constant 0 : i32
    %c0_i32_0 = arith.constant 0 : i32
    %c0_i32_1 = arith.constant 0 : i32
    return %c0_i32, %c0_i32_0 : i32, i32
  }
  func.func @transform_5(%arg0: i32) -> (i32, i32) {
    %c0_i32 = arith.constant 0 : i32
    %c0_i32_0 = arith.constant 0 : i32
    %c0_i32_1 = arith.constant 0 : i32
    return %c0_i32, %c0_i32_0 : i32, i32
  }
  func.func @transform_6(%arg0: i32) -> (i32, i32) {
    %c0_i32 = arith.constant 0 : i32
    %c0_i32_0 = arith.constant 0 : i32
    %c0_i32_1 = arith.constant 0 : i32
    return %c0_i32, %c0_i32_0 : i32, i32
  }
  func.func @transform_7(%arg0: i32) -> (i32, i32) {
    %c0_i32 = arith.constant 0 : i32
    %c0_i32_0 = arith.constant 0 : i32
    %c0_i32_1 = arith.constant 0 : i32
    return %c0_i32, %c0_i32_0 : i32, i32
  }
  func.func @transform_8(%arg0: i32) -> (i32, i32) {
    %c0_i32 = arith.constant 0 : i32
    %c0_i32_0 = arith.constant 0 : i32
    %c0_i32_1 = arith.constant 0 : i32
    return %c0_i32, %c0_i32_0 : i32, i32
  }
  func.func @transform_9(%arg0: i32) -> (i32, i32) {
    %c0_i32 = arith.constant 0 : i32
    %c0_i32_0 = arith.constant 0 : i32
    %c0_i32_1 = arith.constant 0 : i32
    return %c0_i32, %c0_i32_0 : i32, i32
  }
  func.func @transform_10(%arg0: i32) -> (i32, i32) {
    %c0_i32 = arith.constant 0 : i32
    %c0_i32_0 = arith.constant 0 : i32
    %c0_i32_1 = arith.constant 0 : i32
    return %c0_i32, %c0_i32_0 : i32, i32
  }
  func.func @transform_11(%arg0: i32) -> (i32, i32) {
    %c0_i32 = arith.constant 0 : i32
    %c0_i32_0 = arith.constant 0 : i32
    %c0_i32_1 = arith.constant 0 : i32
    return %c0_i32, %c0_i32_0 : i32, i32
  }
  func.func @transform_12(%arg0: i32) -> (i32, i32) {
    %c0_i32 = arith.constant 0 : i32
    %c0_i32_0 = arith.constant 0 : i32
    %c0_i32_1 = arith.constant 0 : i32
    return %c0_i32, %c0_i32_0 : i32, i32
  }
  func.func @transform_13(%arg0: i32) -> (i32, i32) {
    %c0_i32 = arith.constant 0 : i32
    %c0_i32_0 = arith.constant 0 : i32
    return %arg0, %c0_i32 : i32, i32
  }
}

</mosaic_0001>

<llo_original>
// kernel: tpu_custom_call.1
$region0: #{tpu_custom_call.1}
  #allocation0 [shape = 'u32[]', space=smem, size = 0x4, offset = 0x4, fixed_abs, tag = 'smem constant byte address 0x4 - core index']
  #allocation1 [shape = 'u32[144,128]{1,0:T(1,128)}', space=vmem, size = 0x12000, scoped, tag = 'internal scratch']
  %s0 = inlined_call_operand.hbm [shape: bf16[8,32], index: 0, kind: input, shape index: {}]
  %s1 = inlined_call_operand.hbm [shape: bf16[32,128], index: 1, kind: input, shape index: {}]
  %s2 = inlined_call_operand.vmem [shape: f32[1,128], index: 2, kind: input, shape index: {}]
  %s3 = inlined_call_operand.hbm [shape: bf16[128,128], index: 3, kind: input, shape index: {}]
  %s4 = inlined_call_operand.vmem [shape: f32[1,128], index: 4, kind: input, shape index: {}]
  %s5 = inlined_call_operand.hbm [shape: bf16[128,128], index: 5, kind: input, shape index: {}]
  %s6 = inlined_call_operand.vmem [shape: f32[1,128], index: 6, kind: input, shape index: {}]
  %s7 = inlined_call_operand.hbm [shape: bf16[128,128], index: 7, kind: input, shape index: {}]
  %s8 = inlined_call_operand.vmem [shape: f32[1,128], index: 8, kind: input, shape index: {}]
  %s9 = inlined_call_operand.hbm [shape: bf16[128,128], index: 9, kind: input, shape index: {}]
  %s10 = inlined_call_operand.vmem [shape: f32[1,128], index: 10, kind: input, shape index: {}]
  %s11 = inlined_call_operand.hbm [shape: bf16[128,128], index: 11, kind: input, shape index: {}]
  %s12 = inlined_call_operand.vmem [shape: f32[1,128], index: 12, kind: input, shape index: {}]
  %s13 = inlined_call_operand.hbm [shape: f32[8,128], index: 13, kind: output, shape index: {}]
  %s14 = sld [smem:[#allocation0]]
  $region90: #{tpu_custom_call.1} parent=0
    _
  %s16 = ssub.s32 1, %s14
  %s17 = scalar_select 0, %s16, %s14
  $region1: #{tpu_custom_call.1} parent=0
    #allocation2 [shape = 'u8[2048]{0}', space=vmem, size = 0x800, scoped, tag = 'input window, operand 0, single buffered']
    #allocation3 [shape = 's32[1]{0}', space=sflag, size = 0x4, scoped, tag = 'scoped memory for tpu_custom_call.1']
    #allocation4 [shape = 's32[1]{0}', space=sflag, size = 0x4, scoped, tag = 'scoped memory for tpu_custom_call.1']
    #allocation5 [shape = 'u8[8192]{0}', space=vmem, size = 0x2000, scoped, tag = 'input window, operand 1, single buffered']
    #allocation6 [shape = 's32[1]{0}', space=sflag, size = 0x4, scoped, tag = 'scoped memory for tpu_custom_call.1']
    #allocation7 [shape = 'u8[32768]{0}', space=vmem, size = 0x8000, scoped, tag = 'input window, operand 3, single buffered']
    #allocation8 [shape = 'u8[32768]{0}', space=vmem, size = 0x8000, scoped, tag = 'input window, operand 5, single buffered']
    #allocation9 [shape = 's32[1]{0}', space=sflag, size = 0x4, scoped, tag = 'scoped memory for tpu_custom_call.1']
    #allocation10 [shape = 'u8[32768]{0}', space=vmem, size = 0x8000, scoped, tag = 'input window, operand 7, single buffered']
    #allocation11 [shape = 'u8[32768]{0}', space=vmem, size = 0x8000, scoped, tag = 'input window, operand 9, single buffered']
    #allocation12 [shape = 's32[1]{0}', space=sflag, size = 0x4, scoped, tag = 'scoped memory for tpu_custom_call.1']
    #allocation13 [shape = 'u8[32768]{0}', space=vmem, size = 0x8000, scoped, tag = 'input window, operand 11, single buffered']
    #allocation14 [shape = 'u8[4096]{0}', space=vmem, size = 0x1000, scoped, tag = 'output window, operand 0, single buffered']
    %18 = vsyncpa [#allocation3], 0
    %19 = vsyncpa [#allocation6], 0
    %20 = vsyncpa [#allocation9], 0
    %21 = vsyncpa [#allocation12], 0
    %22 = vsyncpa [#allocation4], 0
    // Predicated region
    $region2: #{tpu_custom_call.1} parent=1 // pred_check
      _
    $region3: #{tpu_custom_call.1} parent=1 // pred_check_branch
      %24 = sbr.rel (0) target = $region5
    $region4: #{tpu_custom_call.1} parent=1 // pred_region
      %s26 = ssub.s32 64, 64
      %27 = vsyncadd [#allocation3], %s26
      %s29 = sshll.u32 [#allocation2], 4
      %s30 = int_to_ptr.vmem [resolvable:$true] %s29
      %32 = dma.hbm_to_vmem [thread:$0]  %s0, 64, %s30, [#allocation3]
    $region5: #{tpu_custom_call.1} parent=1 // pred_fallthru
      _
    // Predicated region
    $region6: #{tpu_custom_call.1} parent=1 // pred_check
      _
    $region7: #{tpu_custom_call.1} parent=1 // pred_check_branch
      %34 = sbr.rel (0) target = $region9
    $region8: #{tpu_custom_call.1} parent=1 // pred_region
      %s36 = ssub.s32 256, 256
      %37 = vsyncadd [#allocation6], %s36
      %s38 = sshll.u32 [#allocation5], 4
      %s39 = int_to_ptr.vmem [resolvable:$true] %s38
      %44 = dma.hbm_to_vmem [thread:$0]  %s1, 256, %s39, [#allocation6], 64, 64, 4
    $region9: #{tpu_custom_call.1} parent=1 // pred_fallthru
      _
    // Predicated region
    $region10: #{tpu_custom_call.1} parent=1 // pred_check
      _
    $region11: #{tpu_custom_call.1} parent=1 // pred_check_branch
      %46 = sbr.rel (0) target = $region13
    $region12: #{tpu_custom_call.1} parent=1 // pred_region
      _
    $region13: #{tpu_custom_call.1} parent=1 // pred_fallthru
      _
    // Predicated region
    $region14: #{tpu_custom_call.1} parent=1 // pred_check
      _
    $region15: #{tpu_custom_call.1} parent=1 // pred_check_branch
      %48 = sbr.rel (0) target = $region17
    $region16: #{tpu_custom_call.1} parent=1 // pred_region
      %s50 = ssub.s32 1024, 1024
      %51 = vsyncadd [#allocation6], %s50
      %s52 = sshll.u32 [#allocation7], 4
      %s53 = int_to_ptr.vmem [resolvable:$true] %s52
      %58 = dma.hbm_to_vmem [thread:$0]  %s3, 1024, %s53, [#allocation6], 64, 64, 4
    $region17: #{tpu_custom_call.1} parent=1 // pred_fallthru
      _
    // Predicated region
    $region18: #{tpu_custom_call.1} parent=1 // pred_check
      _
    $region19: #{tpu_custom_call.1} parent=1 // pred_check_branch
      %60 = sbr.rel (0) target = $region21
    $region20: #{tpu_custom_call.1} parent=1 // pred_region
      _
    $region21: #{tpu_custom_call.1} parent=1 // pred_fallthru
      _
    // Predicated region
    $region22: #{tpu_custom_call.1} parent=1 // pred_check
      _
    $region23: #{tpu_custom_call.1} parent=1 // pred_check_branch
      %62 = sbr.rel (0) target = $region25
    $region24: #{tpu_custom_call.1} parent=1 // pred_region
      %s64 = ssub.s32 1024, 1024
      %65 = vsyncadd [#allocation9], %s64
      %s66 = sshll.u32 [#allocation8], 4
      %s67 = int_to_ptr.vmem [resolvable:$true] %s66
      %72 = dma.hbm_to_vmem [thread:$0]  %s5, 1024, %s67, [#allocation9], 64, 64, 4
    $region25: #{tpu_custom_call.1} parent=1 // pred_fallthru
      _
    // Predicated region
    $region26: #{tpu_custom_call.1} parent=1 // pred_check
      _
    $region27: #{tpu_custom_call.1} parent=1 // pred_check_branch
      %74 = sbr.rel (0) target = $region29
    $region28: #{tpu_custom_call.1} parent=1 // pred_region
      _
    $region29: #{tpu_custom_call.1} parent=1 // pred_fallthru
      _
    // Predicated region
    $region30: #{tpu_custom_call.1} parent=1 // pred_check
      _
    $region31: #{tpu_custom_call.1} parent=1 // pred_check_branch
      %76 = sbr.rel (0) target = $region33
    $region32: #{tpu_custom_call.1} parent=1 // pred_region
      %s78 = ssub.s32 1024, 1024
      %79 = vsyncadd [#allocation9], %s78
      %s80 = sshll.u32 [#allocation10], 4
      %s81 = int_to_ptr.vmem [resolvable:$true] %s80
      %86 = dma.hbm_to_vmem [thread:$0]  %s7, 1024, %s81, [#allocation9], 64, 64, 4
    $region33: #{tpu_custom_call.1} parent=1 // pred_fallthru
      _
    // Predicated region
    $region34: #{tpu_custom_call.1} parent=1 // pred_check
      _
    $region35: #{tpu_custom_call.1} parent=1 // pred_check_branch
      %88 = sbr.rel (0) target = $region37
    $region36: #{tpu_custom_call.1} parent=1 // pred_region
      _
    $region37: #{tpu_custom_call.1} parent=1 // pred_fallthru
      _
    // Predicated region
    $region38: #{tpu_custom_call.1} parent=1 // pred_check
      _
    $region39: #{tpu_custom_call.1} parent=1 // pred_check_branch
      %90 = sbr.rel (0) target = $region41
    $region40: #{tpu_custom_call.1} parent=1 // pred_region
      %s92 = ssub.s32 1024, 1024
      %93 = vsyncadd [#allocation12], %s92
      %s94 = sshll.u32 [#allocation11], 4
      %s95 = int_to_ptr.vmem [resolvable:$true] %s94
      %100 = dma.hbm_to_vmem [thread:$0]  %s9, 1024, %s95, [#allocation12], 64, 64, 4
    $region41: #{tpu_custom_call.1} parent=1 // pred_fallthru
      _
    // Predicated region
    $region42: #{tpu_custom_call.1} parent=1 // pred_check
      _
    $region43: #{tpu_custom_call.1} parent=1 // pred_check_branch
      %102 = sbr.rel (0) target = $region45
    $region44: #{tpu_custom_call.1} parent=1 // pred_region
      _
    $region45: #{tpu_custom_call.1} parent=1 // pred_fallthru
      _
    // Predicated region
    $region46: #{tpu_custom_call.1} parent=1 // pred_check
      _
    $region47: #{tpu_custom_call.1} parent=1 // pred_check_branch
      %104 = sbr.rel (0) target = $region49
    $region48: #{tpu_custom_call.1} parent=1 // pred_region
      %s106 = ssub.s32 1024, 1024
      %107 = vsyncadd [#allocation12], %s106
      %s108 = sshll.u32 [#allocation13], 4
      %s109 = int_to_ptr.vmem [resolvable:$true] %s108
      %114 = dma.hbm_to_vmem [thread:$0]  %s11, 1024, %s109, [#allocation12], 64, 64, 4
    $region49: #{tpu_custom_call.1} parent=1 // pred_fallthru
      _
    // Predicated region
    $region50: #{tpu_custom_call.1} parent=1 // pred_check
      _
    $region51: #{tpu_custom_call.1} parent=1 // pred_check_branch
      %116 = sbr.rel (0) target = $region53
    $region52: #{tpu_custom_call.1} parent=1 // pred_region
      _
    $region53: #{tpu_custom_call.1} parent=1 // pred_fallthru
      _
    // Predicated region
    $region54: #{tpu_custom_call.1} parent=1 // pred_check
      _
    $region55: #{tpu_custom_call.1} parent=1 // pred_check_branch
      %118 = sbr.rel (0) target = $region57
    $region56: #{tpu_custom_call.1} parent=1 // pred_region
      %119 = dma.done [#allocation3], 64
    $region57: #{tpu_custom_call.1} parent=1 // pred_fallthru
      _
    // Predicated region
    $region58: #{tpu_custom_call.1} parent=1 // pred_check
      _
    $region59: #{tpu_custom_call.1} parent=1 // pred_check_branch
      %121 = sbr.rel (0) target = $region61
    $region60: #{tpu_custom_call.1} parent=1 // pred_region
      %122 = dma.done [#allocation6], 256
    $region61: #{tpu_custom_call.1} parent=1 // pred_fallthru
      _
    // Predicated region
    $region62: #{tpu_custom_call.1} parent=1 // pred_check
      _
    $region63: #{tpu_custom_call.1} parent=1 // pred_check_branch
      %124 = sbr.rel (0) target = $region65
    $region64: #{tpu_custom_call.1} parent=1 // pred_region
      %125 = dma.done [#allocation6], 1024
    $region65: #{tpu_custom_call.1} parent=1 // pred_fallthru
      _
    // Predicated region
    $region66: #{tpu_custom_call.1} parent=1 // pred_check
      _
    $region67: #{tpu_custom_call.1} parent=1 // pred_check_branch
      %127 = sbr.rel (0) target = $region69
    $region68: #{tpu_custom_call.1} parent=1 // pred_region
      %128 = dma.done [#allocation9], 1024
    $region69: #{tpu_custom_call.1} parent=1 // pred_fallthru
      _
    // Predicated region
    $region70: #{tpu_custom_call.1} parent=1 // pred_check
      _
    $region71: #{tpu_custom_call.1} parent=1 // pred_check_branch
      %130 = sbr.rel (0) target = $region73
    $region72: #{tpu_custom_call.1} parent=1 // pred_region
      %131 = dma.done [#allocation9], 1024
    $region73: #{tpu_custom_call.1} parent=1 // pred_fallthru
      _
    // Predicated region
    $region74: #{tpu_custom_call.1} parent=1 // pred_check
      _
    $region75: #{tpu_custom_call.1} parent=1 // pred_check_branch
      %133 = sbr.rel (0) target = $region77
    $region76: #{tpu_custom_call.1} parent=1 // pred_region
      %134 = dma.done [#allocation12], 1024
    $region77: #{tpu_custom_call.1} parent=1 // pred_fallthru
      _
    // Predicated region
    $region78: #{tpu_custom_call.1} parent=1 // pred_check
      _
    $region79: #{tpu_custom_call.1} parent=1 // pred_check_branch
      %136 = sbr.rel (0) target = $region81
    $region80: #{tpu_custom_call.1} parent=1 // pred_region
      %137 = dma.done [#allocation12], 1024
    $region81: #{tpu_custom_call.1} parent=1 // pred_fallthru
      _
    %v139 = vld [vmem:[#allocation2] sm:$0xf]
    %v140 = vld [vmem:[#allocation5] sm:$0xf]
    %v141 = vld [vmem:[#allocation5 + $0x4] sm:$0xf]
    %v142 = vld [vmem:[#allocation5 + $0x8] sm:$0xf]
    %v143 = vld [vmem:[#allocation5 + $0xc] sm:$0xf]
    %v144 = vld [vmem:[%s2] sm:$0x1]
    %v146 = vlaneseq
    %v147 = vshrl.u32 %v146, 7
    %v148 = vsub.s32 0, %v147
    %v149 = vrot.slane %v144, %v148
    %v155 = vunpack.c.l.b16 %v140
    %v156 = vunpack.c.l.b16 %v141
    %v157 = vunpack.c.l.b16 %v142
    %v158 = vunpack.c.l.b16 %v143
    %v159 = vpack.c.b16 %v156, %v155
    %v160 = vpack.c.b16 %v158, %v157
    %vm163 = vcmask 261120
    %v165 = vsel %vm163, %v139, 0
    %167 = vmatprep.subr.bf16.mxu0 0
    %168 = vmatpush1.bf16.msra.mxu0 %v159
    %169 = vmatprep.subr.bf16.mxu0 0
    %170 = vmatpush1.bf16.msra.mxu0 %v160
    %171 = vmatprep.subr.bf16.mxu0 0
    %172 = vmatpush1.bf16.msra.mxu0 0
    %173 = vmatprep.subr.bf16.mxu0 0
    %174 = vmatpush1.bf16.msra.mxu0 0
    %175 = vmatprep.subr.bf16.mxu0 0
    %176 = vmatpush1.bf16.msra.mxu0 0
    %177 = vmatprep.subr.bf16.mxu0 0
    %178 = vmatpush1.bf16.msra.mxu0 0
    %179 = vmatprep.subr.bf16.mxu0 0
    %180 = vmatpush1.bf16.msra.mxu0 0
    %181 = vmatprep.subr.bf16.mxu0 0
    %182 = vmatpush1.bf16.msra.mxu0 0
    %183 = vmatprep.subr.bf16.mxu0 0
    %184 = vmatpush1.bf16.msra.mxu0 0
    %185 = vmatprep.subr.bf16.mxu0 0
    %186 = vmatpush1.bf16.msra.mxu0 0
    %187 = vmatprep.subr.bf16.mxu0 0
    %188 = vmatpush1.bf16.msra.mxu0 0
    %189 = vmatprep.subr.bf16.mxu0 0
    %190 = vmatpush1.bf16.msra.mxu0 0
    %191 = vmatprep.subr.bf16.mxu0 0
    %192 = vmatpush1.bf16.msra.mxu0 0
    %193 = vmatprep.subr.bf16.mxu0 0
    %194 = vmatpush1.bf16.msra.mxu0 0
    %195 = vmatprep.subr.bf16.mxu0 0
    %196 = vmatpush1.bf16.msra.mxu0 0
    %197 = vmatprep.subr.bf16.mxu0 0
    %198 = vmatpush1.bf16.msra.mxu0 0
    %199 = vmatprep.mubr.bf16.mxu0 0
    %200 = vmatmul.mubr.bf16.gmra.mrb[0].mxu0 %v165
    %v201 = vpop.f32.mrb[0].mxu0
    %v202 = vadd.f32 %v149, %v201
    %v203 = vpop.f32.mrb[0].mxu0
    %v204 = vpop.f32.mrb[0].mxu0
    %v205 = vpop.f32.mrb[0].mxu0
    %206 = vdwg.mxu0
    %v207 = vmax.f32 %v202, 0.0
    %v208 = vpack.c.bf16 %v207, %v207
    %v209 = vld [vmem:[#allocation7] sm:$0xf]
    %v210 = vld [vmem:[#allocation7 + $0x4] sm:$0xf]
    %v211 = vld [vmem:[#allocation7 + $0x8] sm:$0xf]
    %v212 = vld [vmem:[#allocation7 + $0xc] sm:$0xf]
    %v213 = vld [vmem:[#allocation7 + $0x10] sm:$0xf]
    %v214 = vld [vmem:[#allocation7 + $0x14] sm:$0xf]
    %v215 = vld [vmem:[#allocation7 + $0x18] sm:$0xf]
    %v216 = vld [vmem:[#allocation7 + $0x1c] sm:$0xf]
    %v217 = vld [vmem:[#allocation7 + $0x20] sm:$0xf]
    %v218 = vld [vmem:[#allocation7 + $0x24] sm:$0xf]
    %v219 = vld [vmem:[#allocation7 + $0x28] sm:$0xf]
    %v220 = vld [vmem:[#allocation7 + $0x2c] sm:$0xf]
    %v221 = vld [vmem:[#allocation7 + $0x30] sm:$0xf]
    %v222 = vld [vmem:[#allocation7 + $0x34] sm:$0xf]
    %v223 = vld [vmem:[#allocation7 + $0x38] sm:$0xf]
    %v224 = vld [vmem:[#allocation7 + $0x3c] sm:$0xf]
    %v225 = vld [vmem:[%s4] sm:$0x1]
    %v227 = vlaneseq
    %v228 = vshrl.u32 %v227, 7
    %v229 = vsub.s32 0, %v228
    %v230 = vrot.slane %v225, %v229
    %v248 = vunpack.c.l.b16 %v209
    %v249 = vunpack.c.l.b16 %v210
    %v250 = vunpack.c.l.b16 %v211
    %v251 = vunpack.c.l.b16 %v212
    %v252 = vunpack.c.l.b16 %v213
    %v253 = vunpack.c.l.b16 %v214
    %v254 = vunpack.c.l.b16 %v215
    %v255 = vunpack.c.l.b16 %v216
    %v256 = vunpack.c.l.b16 %v217
    %v257 = vunpack.c.l.b16 %v218
    %v258 = vunpack.c.l.b16 %v219
    %v259 = vunpack.c.l.b16 %v220
    %v260 = vunpack.c.l.b16 %v221
    %v261 = vunpack.c.l.b16 %v222
    %v262 = vunpack.c.l.b16 %v223
    %v263 = vunpack.c.l.b16 %v224
    %v264 = vpack.c.b16 %v249, %v248
    %v265 = vpack.c.b16 %v251, %v250
    %v266 = vpack.c.b16 %v253, %v252
    %v267 = vpack.c.b16 %v255, %v254
    %v268 = vpack.c.b16 %v257, %v256
    %v269 = vpack.c.b16 %v259, %v258
    %v270 = vpack.c.b16 %v261, %v260
    %v271 = vpack.c.b16 %v263, %v262
    %280 = vmatprep.subr.bf16.mxu0 0
    %281 = vmatpush1.bf16.msra.mxu0 %v264
    %282 = vmatprep.subr.bf16.mxu0 0
    %283 = vmatpush1.bf16.msra.mxu0 %v265
    %284 = vmatprep.subr.bf16.mxu0 0
    %285 = vmatpush1.bf16.msra.mxu0 %v266
    %286 = vmatprep.subr.bf16.mxu0 0
    %287 = vmatpush1.bf16.msra.mxu0 %v267
    %288 = vmatprep.subr.bf16.mxu0 0
    %289 = vmatpush1.bf16.msra.mxu0 %v268
    %290 = vmatprep.subr.bf16.mxu0 0
    %291 = vmatpush1.bf16.msra.mxu0 %v269
    %292 = vmatprep.subr.bf16.mxu0 0
    %293 = vmatpush1.bf16.msra.mxu0 %v270
    %294 = vmatprep.subr.bf16.mxu0 0
    %295 = vmatpush1.bf16.msra.mxu0 %v271
    %296 = vmatprep.subr.bf16.mxu0 0
    %297 = vmatpush1.bf16.msra.mxu0 0
    %298 = vmatprep.subr.bf16.mxu0 0
    %299 = vmatpush1.bf16.msra.mxu0 0
    %300 = vmatprep.subr.bf16.mxu0 0
    %301 = vmatpush1.bf16.msra.mxu0 0
    %302 = vmatprep.subr.bf16.mxu0 0
    %303 = vmatpush1.bf16.msra.mxu0 0
    %304 = vmatprep.subr.bf16.mxu0 0
    %305 = vmatpush1.bf16.msra.mxu0 0
    %306 = vmatprep.subr.bf16.mxu0 0
    %307 = vmatpush1.bf16.msra.mxu0 0
    %308 = vmatprep.subr.bf16.mxu0 0
    %309 = vmatpush1.bf16.msra.mxu0 0
    %310 = vmatprep.subr.bf16.mxu0 0
    %311 = vmatpush1.bf16.msra.mxu0 0
    %312 = vmatprep.mubr.bf16.mxu0 0
    %313 = vmatmul.mubr.bf16.gmra.mrb[0].mxu0 %v208
    %v314 = vpop.f32.mrb[0].mxu0
    %v315 = vadd.f32 %v230, %v314
    %v316 = vpop.f32.mrb[0].mxu0
    %v317 = vpop.f32.mrb[0].mxu0
    %v318 = vpop.f32.mrb[0].mxu0
    %319 = vdwg.mxu0
    %v320 = vmax.f32 %v315, 0.0
    %v321 = vpack.c.bf16 %v320, %v320
    %v322 = vld [vmem:[#allocation8] sm:$0xf]
    %v323 = vld [vmem:[#allocation8 + $0x4] sm:$0xf]
    %v324 = vld [vmem:[#allocation8 + $0x8] sm:$0xf]
    %v325 = vld [vmem:[#allocation8 + $0xc] sm:$0xf]
    %v326 = vld [vmem:[#allocation8 + $0x10] sm:$0xf]
    %v327 = vld [vmem:[#allocation8 + $0x14] sm:$0xf]
    %v328 = vld [vmem:[#allocation8 + $0x18] sm:$0xf]
    %v329 = vld [vmem:[#allocation8 + $0x1c] sm:$0xf]
    %v330 = vld [vmem:[#allocation8 + $0x20] sm:$0xf]
    %v331 = vld [vmem:[#allocation8 + $0x24] sm:$0xf]
    %v332 = vld [vmem:[#allocation8 + $0x28] sm:$0xf]
    %v333 = vld [vmem:[#allocation8 + $0x2c] sm:$0xf]
    %v334 = vld [vmem:[#allocation8 + $0x30] sm:$0xf]
    %v335 = vld [vmem:[#allocation8 + $0x34] sm:$0xf]
    %v336 = vld [vmem:[#allocation8 + $0x38] sm:$0xf]
    %v337 = vld [vmem:[#allocation8 + $0x3c] sm:$0xf]
    %v338 = vld [vmem:[%s6] sm:$0x1]
    %v340 = vlaneseq
    %v341 = vshrl.u32 %v340, 7
    %v342 = vsub.s32 0, %v341
    %v343 = vrot.slane %v338, %v342
    %v361 = vunpack.c.l.b16 %v322
    %v362 = vunpack.c.l.b16 %v323
    %v363 = vunpack.c.l.b16 %v324
    %v364 = vunpack.c.l.b16 %v325
    %v365 = vunpack.c.l.b16 %v326
    %v366 = vunpack.c.l.b16 %v327
    %v367 = vunpack.c.l.b16 %v328
    %v368 = vunpack.c.l.b16 %v329
    %v369 = vunpack.c.l.b16 %v330
    %v370 = vunpack.c.l.b16 %v331
    %v371 = vunpack.c.l.b16 %v332
    %v372 = vunpack.c.l.b16 %v333
    %v373 = vunpack.c.l.b16 %v334
    %v374 = vunpack.c.l.b16 %v335
    %v375 = vunpack.c.l.b16 %v336
    %v376 = vunpack.c.l.b16 %v337
    %v377 = vpack.c.b16 %v362, %v361
    %v378 = vpack.c.b16 %v364, %v363
    %v379 = vpack.c.b16 %v366, %v365
    %v380 = vpack.c.b16 %v368, %v367
    %v381 = vpack.c.b16 %v370, %v369
    %v382 = vpack.c.b16 %v372, %v371
    %v383 = vpack.c.b16 %v374, %v373
    %v384 = vpack.c.b16 %v376, %v375
    %393 = vmatprep.subr.bf16.mxu0 0
    %394 = vmatpush1.bf16.msra.mxu0 %v377
    %395 = vmatprep.subr.bf16.mxu0 0
    %396 = vmatpush1.bf16.msra.mxu0 %v378
    %397 = vmatprep.subr.bf16.mxu0 0
    %398 = vmatpush1.bf16.msra.mxu0 %v379
    %399 = vmatprep.subr.bf16.mxu0 0
    %400 = vmatpush1.bf16.msra.mxu0 %v380
    %401 = vmatprep.subr.bf16.mxu0 0
    %402 = vmatpush1.bf16.msra.mxu0 %v381
    %403 = vmatprep.subr.bf16.mxu0 0
    %404 = vmatpush1.bf16.msra.mxu0 %v382
    %405 = vmatprep.subr.bf16.mxu0 0
    %406 = vmatpush1.bf16.msra.mxu0 %v383
    %407 = vmatprep.subr.bf16.mxu0 0
    %408 = vmatpush1.bf16.msra.mxu0 %v384
    %409 = vmatprep.subr.bf16.mxu0 0
    %410 = vmatpush1.bf16.msra.mxu0 0
    %411 = vmatprep.subr.bf16.mxu0 0
    %412 = vmatpush1.bf16.msra.mxu0 0
    %413 = vmatprep.subr.bf16.mxu0 0
    %414 = vmatpush1.bf16.msra.mxu0 0
    %415 = vmatprep.subr.bf16.mxu0 0
    %416 = vmatpush1.bf16.msra.mxu0 0
    %417 = vmatprep.subr.bf16.mxu0 0
    %418 = vmatpush1.bf16.msra.mxu0 0
    %419 = vmatprep.subr.bf16.mxu0 0
    %420 = vmatpush1.bf16.msra.mxu0 0
    %421 = vmatprep.subr.bf16.mxu0 0
    %422 = vmatpush1.bf16.msra.mxu0 0
    %423 = vmatprep.subr.bf16.mxu0 0
    %424 = vmatpush1.bf16.msra.mxu0 0
    %425 = vmatprep.mubr.bf16.mxu0 0
    %426 = vmatmul.mubr.bf16.gmra.mrb[0].mxu0 %v321
    %v427 = vpop.f32.mrb[0].mxu0
    %v428 = vadd.f32 %v343, %v427
    %v429 = vpop.f32.mrb[0].mxu0
    %v430 = vpop.f32.mrb[0].mxu0
    %v431 = vpop.f32.mrb[0].mxu0
    %432 = vdwg.mxu0
    %v433 = vmax.f32 %v428, 0.0
    %v434 = vpack.c.bf16 %v433, %v433
    %v435 = vld [vmem:[#allocation10] sm:$0xf]
    %v436 = vld [vmem:[#allocation10 + $0x4] sm:$0xf]
    %v437 = vld [vmem:[#allocation10 + $0x8] sm:$0xf]
    %v438 = vld [vmem:[#allocation10 + $0xc] sm:$0xf]
    %v439 = vld [vmem:[#allocation10 + $0x10] sm:$0xf]
    %v440 = vld [vmem:[#allocation10 + $0x14] sm:$0xf]
    %v441 = vld [vmem:[#allocation10 + $0x18] sm:$0xf]
    %v442 = vld [vmem:[#allocation10 + $0x1c] sm:$0xf]
    %v443 = vld [vmem:[#allocation10 + $0x20] sm:$0xf]
    %v444 = vld [vmem:[#allocation10 + $0x24] sm:$0xf]
    %v445 = vld [vmem:[#allocation10 + $0x28] sm:$0xf]
    %v446 = vld [vmem:[#allocation10 + $0x2c] sm:$0xf]
    %v447 = vld [vmem:[#allocation10 + $0x30] sm:$0xf]
    %v448 = vld [vmem:[#allocation10 + $0x34] sm:$0xf]
    %v449 = vld [vmem:[#allocation10 + $0x38] sm:$0xf]
    %v450 = vld [vmem:[#allocation10 + $0x3c] sm:$0xf]
    %v451 = vld [vmem:[%s8] sm:$0x1]
    %v453 = vlaneseq
    %v454 = vshrl.u32 %v453, 7
    %v455 = vsub.s32 0, %v454
    %v456 = vrot.slane %v451, %v455
    %v474 = vunpack.c.l.b16 %v435
    %v475 = vunpack.c.l.b16 %v436
    %v476 = vunpack.c.l.b16 %v437
    %v477 = vunpack.c.l.b16 %v438
    %v478 = vunpack.c.l.b16 %v439
    %v479 = vunpack.c.l.b16 %v440
    %v480 = vunpack.c.l.b16 %v441
    %v481 = vunpack.c.l.b16 %v442
    %v482 = vunpack.c.l.b16 %v443
    %v483 = vunpack.c.l.b16 %v444
    %v484 = vunpack.c.l.b16 %v445
    %v485 = vunpack.c.l.b16 %v446
    %v486 = vunpack.c.l.b16 %v447
    %v487 = vunpack.c.l.b16 %v448
    %v488 = vunpack.c.l.b16 %v449
    %v489 = vunpack.c.l.b16 %v450
    %v490 = vpack.c.b16 %v475, %v474
    %v491 = vpack.c.b16 %v477, %v476
    %v492 = vpack.c.b16 %v479, %v478
    %v493 = vpack.c.b16 %v481, %v480
    %v494 = vpack.c.b16 %v483, %v482
    %v495 = vpack.c.b16 %v485, %v484
    %v496 = vpack.c.b16 %v487, %v486
    %v497 = vpack.c.b16 %v489, %v488
    %506 = vmatprep.subr.bf16.mxu0 0
    %507 = vmatpush1.bf16.msra.mxu0 %v490
    %508 = vmatprep.subr.bf16.mxu0 0
    %509 = vmatpush1.bf16.msra.mxu0 %v491
    %510 = vmatprep.subr.bf16.mxu0 0
    %511 = vmatpush1.bf16.msra.mxu0 %v492
    %512 = vmatprep.subr.bf16.mxu0 0
    %513 = vmatpush1.bf16.msra.mxu0 %v493
    %514 = vmatprep.subr.bf16.mxu0 0
    %515 = vmatpush1.bf16.msra.mxu0 %v494
    %516 = vmatprep.subr.bf16.mxu0 0
    %517 = vmatpush1.bf16.msra.mxu0 %v495
    %518 = vmatprep.subr.bf16.mxu0 0
    %519 = vmatpush1.bf16.msra.mxu0 %v496
    %520 = vmatprep.subr.bf16.mxu0 0
    %521 = vmatpush1.bf16.msra.mxu0 %v497
    %522 = vmatprep.subr.bf16.mxu0 0
    %523 = vmatpush1.bf16.msra.mxu0 0
    %524 = vmatprep.subr.bf16.mxu0 0
    %525 = vmatpush1.bf16.msra.mxu0 0
    %526 = vmatprep.subr.bf16.mxu0 0
    %527 = vmatpush1.bf16.msra.mxu0 0
    %528 = vmatprep.subr.bf16.mxu0 0
    %529 = vmatpush1.bf16.msra.mxu0 0
    %530 = vmatprep.subr.bf16.mxu0 0
    %531 = vmatpush1.bf16.msra.mxu0 0
    %532 = vmatprep.subr.bf16.mxu0 0
    %533 = vmatpush1.bf16.msra.mxu0 0
    %534 = vmatprep.subr.bf16.mxu0 0
    %535 = vmatpush1.bf16.msra.mxu0 0
    %536 = vmatprep.subr.bf16.mxu0 0
    %537 = vmatpush1.bf16.msra.mxu0 0
    %538 = vmatprep.mubr.bf16.mxu0 0
    %539 = vmatmul.mubr.bf16.gmra.mrb[0].mxu0 %v434
    %v540 = vpop.f32.mrb[0].mxu0
    %v541 = vadd.f32 %v456, %v540
    %v542 = vpop.f32.mrb[0].mxu0
    %v543 = vpop.f32.mrb[0].mxu0
    %v544 = vpop.f32.mrb[0].mxu0
    %545 = vdwg.mxu0
    %v546 = vmax.f32 %v541, 0.0
    %v547 = vpack.c.bf16 %v546, %v546
    %v548 = vld [vmem:[#allocation11] sm:$0xf]
    %v549 = vld [vmem:[#allocation11 + $0x4] sm:$0xf]
    %v550 = vld [vmem:[#allocation11 + $0x8] sm:$0xf]
    %v551 = vld [vmem:[#allocation11 + $0xc] sm:$0xf]
    %v552 = vld [vmem:[#allocation11 + $0x10] sm:$0xf]
    %v553 = vld [vmem:[#allocation11 + $0x14] sm:$0xf]
    %v554 = vld [vmem:[#allocation11 + $0x18] sm:$0xf]
    %v555 = vld [vmem:[#allocation11 + $0x1c] sm:$0xf]
    %v556 = vld [vmem:[#allocation11 + $0x20] sm:$0xf]
    %v557 = vld [vmem:[#allocation11 + $0x24] sm:$0xf]
    %v558 = vld [vmem:[#allocation11 + $0x28] sm:$0xf]
    %v559 = vld [vmem:[#allocation11 + $0x2c] sm:$0xf]
    %v560 = vld [vmem:[#allocation11 + $0x30] sm:$0xf]
    %v561 = vld [vmem:[#allocation11 + $0x34] sm:$0xf]
    %v562 = vld [vmem:[#allocation11 + $0x38] sm:$0xf]
    %v563 = vld [vmem:[#allocation11 + $0x3c] sm:$0xf]
    %v564 = vld [vmem:[%s10] sm:$0x1]
    %v566 = vlaneseq
    %v567 = vshrl.u32 %v566, 7
    %v568 = vsub.s32 0, %v567
    %v569 = vrot.slane %v564, %v568
    %v587 = vunpack.c.l.b16 %v548
    %v588 = vunpack.c.l.b16 %v549
    %v589 = vunpack.c.l.b16 %v550
    %v590 = vunpack.c.l.b16 %v551
    %v591 = vunpack.c.l.b16 %v552
    %v592 = vunpack.c.l.b16 %v553
    %v593 = vunpack.c.l.b16 %v554
    %v594 = vunpack.c.l.b16 %v555
    %v595 = vunpack.c.l.b16 %v556
    %v596 = vunpack.c.l.b16 %v557
    %v597 = vunpack.c.l.b16 %v558
    %v598 = vunpack.c.l.b16 %v559
    %v599 = vunpack.c.l.b16 %v560
    %v600 = vunpack.c.l.b16 %v561
    %v601 = vunpack.c.l.b16 %v562
    %v602 = vunpack.c.l.b16 %v563
    %v603 = vpack.c.b16 %v588, %v587
    %v604 = vpack.c.b16 %v590, %v589
    %v605 = vpack.c.b16 %v592, %v591
    %v606 = vpack.c.b16 %v594, %v593
    %v607 = vpack.c.b16 %v596, %v595
    %v608 = vpack.c.b16 %v598, %v597
    %v609 = vpack.c.b16 %v600, %v599
    %v610 = vpack.c.b16 %v602, %v601
    %619 = vmatprep.subr.bf16.mxu0 0
    %620 = vmatpush1.bf16.msra.mxu0 %v603
    %621 = vmatprep.subr.bf16.mxu0 0
    %622 = vmatpush1.bf16.msra.mxu0 %v604
    %623 = vmatprep.subr.bf16.mxu0 0
    %624 = vmatpush1.bf16.msra.mxu0 %v605
    %625 = vmatprep.subr.bf16.mxu0 0
    %626 = vmatpush1.bf16.msra.mxu0 %v606
    %627 = vmatprep.subr.bf16.mxu0 0
    %628 = vmatpush1.bf16.msra.mxu0 %v607
    %629 = vmatprep.subr.bf16.mxu0 0
    %630 = vmatpush1.bf16.msra.mxu0 %v608
    %631 = vmatprep.subr.bf16.mxu0 0
    %632 = vmatpush1.bf16.msra.mxu0 %v609
    %633 = vmatprep.subr.bf16.mxu0 0
    %634 = vmatpush1.bf16.msra.mxu0 %v610
    %635 = vmatprep.subr.bf16.mxu0 0
    %636 = vmatpush1.bf16.msra.mxu0 0
    %637 = vmatprep.subr.bf16.mxu0 0
    %638 = vmatpush1.bf16.msra.mxu0 0
    %639 = vmatprep.subr.bf16.mxu0 0
    %640 = vmatpush1.bf16.msra.mxu0 0
    %641 = vmatprep.subr.bf16.mxu0 0
    %642 = vmatpush1.bf16.msra.mxu0 0
    %643 = vmatprep.subr.bf16.mxu0 0
    %644 = vmatpush1.bf16.msra.mxu0 0
    %645 = vmatprep.subr.bf16.mxu0 0
    %646 = vmatpush1.bf16.msra.mxu0 0
    %647 = vmatprep.subr.bf16.mxu0 0
    %648 = vmatpush1.bf16.msra.mxu0 0
    %649 = vmatprep.subr.bf16.mxu0 0
    %650 = vmatpush1.bf16.msra.mxu0 0
    %651 = vmatprep.mubr.bf16.mxu0 0
    %652 = vmatmul.mubr.bf16.gmra.mrb[0].mxu0 %v547
    %v653 = vpop.f32.mrb[0].mxu0
    %v654 = vadd.f32 %v569, %v653
    %v655 = vpop.f32.mrb[0].mxu0
    %v656 = vpop.f32.mrb[0].mxu0
    %v657 = vpop.f32.mrb[0].mxu0
    %658 = vdwg.mxu0
    %v659 = vmax.f32 %v654, 0.0
    %v660 = vpack.c.bf16 %v659, %v659
    %v661 = vld [vmem:[#allocation13] sm:$0xf]
    %v662 = vld [vmem:[#allocation13 + $0x4] sm:$0xf]
    %v663 = vld [vmem:[#allocation13 + $0x8] sm:$0xf]
    %v664 = vld [vmem:[#allocation13 + $0xc] sm:$0xf]
    %v665 = vld [vmem:[#allocation13 + $0x10] sm:$0xf]
    %v666 = vld [vmem:[#allocation13 + $0x14] sm:$0xf]
    %v667 = vld [vmem:[#allocation13 + $0x18] sm:$0xf]
    %v668 = vld [vmem:[#allocation13 + $0x1c] sm:$0xf]
    %v669 = vld [vmem:[#allocation13 + $0x20] sm:$0xf]
    %v670 = vld [vmem:[#allocation13 + $0x24] sm:$0xf]
    %v671 = vld [vmem:[#allocation13 + $0x28] sm:$0xf]
    %v672 = vld [vmem:[#allocation13 + $0x2c] sm:$0xf]
    %v673 = vld [vmem:[#allocation13 + $0x30] sm:$0xf]
    %v674 = vld [vmem:[#allocation13 + $0x34] sm:$0xf]
    %v675 = vld [vmem:[#allocation13 + $0x38] sm:$0xf]
    %v676 = vld [vmem:[#allocation13 + $0x3c] sm:$0xf]
    %v677 = vld [vmem:[%s12] sm:$0x1]
    %v679 = vlaneseq
    %v680 = vshrl.u32 %v679, 7
    %v681 = vsub.s32 0, %v680
    %v682 = vrot.slane %v677, %v681
    %v700 = vunpack.c.l.b16 %v661
    %v701 = vunpack.c.l.b16 %v662
    %v702 = vunpack.c.l.b16 %v663
    %v703 = vunpack.c.l.b16 %v664
    %v704 = vunpack.c.l.b16 %v665
    %v705 = vunpack.c.l.b16 %v666
    %v706 = vunpack.c.l.b16 %v667
    %v707 = vunpack.c.l.b16 %v668
    %v708 = vunpack.c.l.b16 %v669
    %v709 = vunpack.c.l.b16 %v670
    %v710 = vunpack.c.l.b16 %v671
    %v711 = vunpack.c.l.b16 %v672
    %v712 = vunpack.c.l.b16 %v673
    %v713 = vunpack.c.l.b16 %v674
    %v714 = vunpack.c.l.b16 %v675
    %v715 = vunpack.c.l.b16 %v676
    %v716 = vpack.c.b16 %v701, %v700
    %v717 = vpack.c.b16 %v703, %v702
    %v718 = vpack.c.b16 %v705, %v704
    %v719 = vpack.c.b16 %v707, %v706
    %v720 = vpack.c.b16 %v709, %v708
    %v721 = vpack.c.b16 %v711, %v710
    %v722 = vpack.c.b16 %v713, %v712
    %v723 = vpack.c.b16 %v715, %v714
    %732 = vmatprep.subr.bf16.mxu0 0
    %733 = vmatpush1.bf16.msra.mxu0 %v716
    %734 = vmatprep.subr.bf16.mxu0 0
    %735 = vmatpush1.bf16.msra.mxu0 %v717
    %736 = vmatprep.subr.bf16.mxu0 0
    %737 = vmatpush1.bf16.msra.mxu0 %v718
    %738 = vmatprep.subr.bf16.mxu0 0
    %739 = vmatpush1.bf16.msra.mxu0 %v719
    %740 = vmatprep.subr.bf16.mxu0 0
    %741 = vmatpush1.bf16.msra.mxu0 %v720
    %742 = vmatprep.subr.bf16.mxu0 0
    %743 = vmatpush1.bf16.msra.mxu0 %v721
    %744 = vmatprep.subr.bf16.mxu0 0
    %745 = vmatpush1.bf16.msra.mxu0 %v722
    %746 = vmatprep.subr.bf16.mxu0 0
    %747 = vmatpush1.bf16.msra.mxu0 %v723
    %748 = vmatprep.subr.bf16.mxu0 0
    %749 = vmatpush1.bf16.msra.mxu0 0
    %750 = vmatprep.subr.bf16.mxu0 0
    %751 = vmatpush1.bf16.msra.mxu0 0
    %752 = vmatprep.subr.bf16.mxu0 0
    %753 = vmatpush1.bf16.msra.mxu0 0
    %754 = vmatprep.subr.bf16.mxu0 0
    %755 = vmatpush1.bf16.msra.mxu0 0
    %756 = vmatprep.subr.bf16.mxu0 0
    %757 = vmatpush1.bf16.msra.mxu0 0
    %758 = vmatprep.subr.bf16.mxu0 0
    %759 = vmatpush1.bf16.msra.mxu0 0
    %760 = vmatprep.subr.bf16.mxu0 0
    %761 = vmatpush1.bf16.msra.mxu0 0
    %762 = vmatprep.subr.bf16.mxu0 0
    %763 = vmatpush1.bf16.msra.mxu0 0
    %764 = vmatprep.mubr.bf16.mxu0 0
    %765 = vmatmul.mubr.bf16.gmra.mrb[0].mxu0 %v660
    %v766 = vpop.f32.mrb[0].mxu0
    %v767 = vadd.f32 %v682, %v766
    %v768 = vpop.f32.mrb[0].mxu0
    %v769 = vpop.f32.mrb[0].mxu0
    %v770 = vpop.f32.mrb[0].mxu0
    %771 = vdwg.mxu0
    %v772 = vtanh.pop %v767
    %773 = vst [vmem:[#allocation14] sm:$0xff] %v772
    // Predicated region
    $region82: #{tpu_custom_call.1} parent=1 // pred_check
      _
    $region83: #{tpu_custom_call.1} parent=1 // pred_check_branch
      %775 = sbr.rel (0) target = $region85
    $region84: #{tpu_custom_call.1} parent=1 // pred_region
      %s777 = ssub.s32 128, 128
      %778 = vsyncadd [#allocation4], %s777
      %s780 = sshll.u32 [#allocation14], 4
      %s781 = int_to_ptr.vmem [resolvable:$true] %s780
      %783 = dma.vmem_to_hbm [thread:$0]  %s781, 128, %s13, [#allocation4]
    $region85: #{tpu_custom_call.1} parent=1 // pred_fallthru
      _
    // Predicated region
    $region86: #{tpu_custom_call.1} parent=1 // pred_check
      _
    $region87: #{tpu_custom_call.1} parent=1 // pred_check_branch
      %785 = sbr.rel (0) target = $region89
    $region88: #{tpu_custom_call.1} parent=1 // pred_region
      %786 = dma.done [#allocation4], 128
    $region89: #{tpu_custom_call.1} parent=1 // pred_fallthru
      _
    %787 = vsyncpa [#allocation3], 1
    %788 = vsyncpa [#allocation6], 1
    %789 = vsyncpa [#allocation9], 1
    %790 = vsyncpa [#allocation12], 1
    %791 = vsyncpa [#allocation4], 1

</llo_original>
